<compile_context>
chip_gen: v7x
topology: tpu7x:2x2x1
jax: 0.10.0
libtpu: 0.0.40
codegen_flags: <defaults>
</compile_context>

<pallas_src>
import math

import numpy as np
import jax
import jax.numpy as jnp
from jax.experimental import pallas as pl
from jax.experimental.pallas import tpu as pltpu

_LANE = 128


# ----------------------------------------------------------------------------
# One-time (parameter-load-time) weight preparation
# ----------------------------------------------------------------------------
def _adaptive_bins(length, out=2):
    """AdaptiveAvgPool bin boundaries, matching PyTorch (handles odd sizes)."""
    return [
        (int(math.floor(i * length / out)), int(math.ceil((i + 1) * length / out)))
        for i in range(out)
    ]


def prepare_params(w1, b1, w2, b2, C, H, W):
    """Fold AdaptiveAvgPool2d(2) into linear1 (bf16), pad linear2 to 128 lanes.

    w1: (128, 4C), b1: (128,), w2: (N, 128), b2: (N,)
    Returns:
      w_eff (chw_pad, 128) bf16  -- fused pool+linear1, rows zero-padded to a
                                    multiple of 128 so the K axis can be tiled
      b1    (1, 128)       f32
      w2_p  (128, n_pad)   bf16  -- transposed + lane-padded
      b2_p  (1, n_pad)     f32   -- padded lanes hold -1e30 (zero softmax mass)
    """
    hidden = w1.shape[0]
    n_out = w2.shape[0]
    assert w1.shape[1] == 4 * C, "linear1 expects 2*2*C input features"

    # Pooling matrix P: (H*W, 4).  P[h*W+w, qi*2+qj] = 1/|bin| if pixel in bin.
    P = np.zeros((H * W, 4), dtype=np.float64)
    for qi, (hs, he) in enumerate(_adaptive_bins(H)):
        for qj, (ws, we) in enumerate(_adaptive_bins(W)):
            inv = 1.0 / float((he - hs) * (we - ws))
            for hh in range(hs, he):
                for ww in range(ws, we):
                    P[hh * W + ww, qi * 2 + qj] += inv

    # PyTorch flatten order of the pooled tensor is feature index c*4 + q.
    w1_np = np.asarray(w1, dtype=np.float64).T.reshape(C, 4, hidden)  # (C,4,128)
    # W_eff[c*H*W + s, j] = sum_q P[s, q] * w1[j, c*4 + q]
    w_eff = np.einsum("sq,cqj->csj", P, w1_np).reshape(C * H * W, hidden)

    chw = C * H * W
    chw_pad = _LANE * -(-chw // _LANE)
    if chw_pad != chw:
        w_eff = np.concatenate(
            [w_eff, np.zeros((chw_pad - chw, hidden), dtype=w_eff.dtype)], axis=0)

    # Pad linear2 to a full 128-lane output; padded columns: zero weight and a
    # huge negative bias so exp(logit - max) underflows to exactly 0.
    n_pad = _LANE * -(-n_out // _LANE)
    w2_p = np.zeros((hidden, n_pad), dtype=np.float32)
    w2_p[:, :n_out] = np.asarray(w2, dtype=np.float32).T
    b2_p = np.full((1, n_pad), -1e30, dtype=np.float32)
    b2_p[0, :n_out] = np.asarray(b2, dtype=np.float32)

    # TODO(synk): for extreme C*H*W where even the streamed fused weight's HBM
    # traffic dominates, do the 2x2 pool in-kernel ((H*W,4) matmul per channel)
    # and keep the original (4C,128) linear1.
    return (
        jnp.asarray(w_eff, dtype=jnp.bfloat16),
        jnp.asarray(b1, dtype=jnp.float32).reshape(1, hidden),
        jnp.asarray(w2_p, dtype=jnp.bfloat16),
        jnp.asarray(b2_p),
    )


# ----------------------------------------------------------------------------
# Kernel
# ----------------------------------------------------------------------------
def _get_sr_ratio_kernel(x_ref, w1_ref, b1_ref, w2_ref, b2_ref, o_ref, acc_ref):
    # x_ref:  (TB, TK)   f32 activations (pool folded into w1); bf16-cast for MXU
    # w1_ref: (TK, 128)  bf16 fused pool+linear1 weight, streamed along K
    # b1_ref: (1, 128)   f32
    # w2_ref: (128, NP)  bf16 linear2 weight, transposed + lane-padded (resident)
    # b2_ref: (1, NP)    f32, padded columns hold -1e30
    # o_ref:  (TB, NP)   f32
    # acc_ref:(TB, 128)  f32 accumulator scratch (persists across K steps)
    k = pl.program_id(1)

    @pl.when(k == 0)
    def _():
        acc_ref[...] = jnp.zeros_like(acc_ref)

    acc_ref[...] += jnp.dot(
        x_ref[...].astype(jnp.bfloat16), w1_ref[...],
        preferred_element_type=jnp.float32)

    @pl.when(k == pl.num_programs(1) - 1)
    def _():
        h = jnp.maximum(acc_ref[...] + b1_ref[...], 0.0)  # ReLU, f32 epilogue
        logits = jnp.dot(h.astype(jnp.bfloat16), w2_ref[...],
                         preferred_element_type=jnp.float32) + b2_ref[...]
        # softmax over the lane axis (padded lanes contribute exactly 0 mass)
        m = jnp.max(logits, axis=-1, keepdims=True)
        e = jnp.exp(logits - m)
        s = jnp.sum(e, axis=-1, keepdims=True)
        r = pl.reciprocal(s, approx=True)   # EUP vrcp slot (frees the VPU)
        r = r * (2.0 - s * r)               # one Newton step -> ~f32 accuracy
        o_ref[...] = e * r


# ----------------------------------------------------------------------------
# VMEM budgeting helpers
# ----------------------------------------------------------------------------
def _tpu_vmem_capacity():
    try:
        info = pltpu.get_tpu_info()
        cap = getattr(info, "vmem_capacity_bytes", None)
        if cap:
            return int(cap)
    except Exception:
        pass
    return 64 << 20  # conservative fallback (v7x per-TC VMEM)


def _pick_k_tile(chw_pad, hidden, budget_bytes, max_k_tile=None):
    """Largest K tile (a 128-multiple divisor of chw_pad) whose double-buffered
    bf16 w1 block uses at most ~1/3 of the VMEM budget."""
    n_blocks = chw_pad // _LANE
    for n_k in range(1, n_blocks + 1):
        if n_blocks % n_k:
            continue
        tk = chw_pad // n_k
        if max_k_tile is not None and tk > max_k_tile:
            continue
        if 2 * tk * hidden * 2 <= budget_bytes // 3:
            return tk
    return _LANE


def _pick_batch_tile(B, tk, n_pad, hidden, resident_bytes, budget_bytes):
    """Largest batch tile whose double-buffered x/out tiles + (double-buffered)
    weight blocks + f32 accumulator fit the per-generation VMEM budget."""
    tb = 8
    for cand in (2048, 1024, 512, 256, 128, 64, 32, 16, 8):
        need = (resident_bytes
                + 2 * cand * tk * 4        # double-buffered f32 x tile
                + 2 * cand * n_pad * 4     # double-buffered f32 out tile
                + cand * hidden * 4)       # f32 accumulator scratch
        if need <= budget_bytes:
            tb = cand
            break
    # Keep >=2 batch programs when possible so both v7x TensorCores get work.
    tb = min(tb, max(8, 8 * pl.cdiv(B, 16)))
    # Limit batch-padding waste (>~12.5%): padded rows are wasted DMA+MXU work.
    while tb > 8:
        pad = tb * pl.cdiv(B, tb) - B
        if pad < 8 or pad * 8 <= B:
            break
        tb = 8 * pl.cdiv(tb // 2, 8)
    return tb


# ----------------------------------------------------------------------------
# Wrapper
# ----------------------------------------------------------------------------
def get_sr_ratio_pallas(x, w_eff, b1_2d, w2_p, b2_p, n_out, *, max_k_tile=None):
    """x: (B, C, H, W) f32; prepared params from prepare_params(); n_out = N."""
    B, C, H, W = x.shape
    chw = C * H * W
    chw_pad, hidden = w_eff.shape
    n_pad = w2_p.shape[1]
    assert chw_pad == _LANE * -(-chw // _LANE)

    cap = _tpu_vmem_capacity()
    budget = cap // 2                          # per-generation VMEM budget
    vmem_limit = min(int(cap * 3 // 4), 112 << 20)

    tk = _pick_k_tile(chw_pad, hidden, budget, max_k_tile)
    k_tiles = chw_pad // tk

    # Pallas double-buffers every input block, even grid-invariant ones.
    resident = (2 * tk * hidden * 2            # bf16 w1 K-block
                + 2 * hidden * 4               # f32 b1
                + 2 * hidden * n_pad * 2       # bf16 w2
                + 2 * n_pad * 4)               # f32 b2
    tb = _pick_batch_tile(B, tk, n_pad, hidden, resident, budget)
    b_pad = tb * pl.cdiv(B, tb)

    # Lane-dense activation layout: wide contiguous dim last (free XLA reshape).
    x_flat = x.reshape(B, chw)
    if b_pad != B or chw_pad != chw:
        x_flat = jnp.pad(x_flat, ((0, b_pad - B), (0, chw_pad - chw)))

    out = pl.pallas_call(
        _get_sr_ratio_kernel,
        out_shape=jax.ShapeDtypeStruct((b_pad, n_pad), jnp.float32),
        grid=(b_pad // tb, k_tiles),
        in_specs=[
            pl.BlockSpec((tb, tk), lambda i, k: (i, k)),         # x (pipelined)
            pl.BlockSpec((tk, hidden), lambda i, k: (k, 0)),     # fused w1 (K-streamed)
            pl.BlockSpec((1, hidden), lambda i, k: (0, 0)),      # b1
            pl.BlockSpec((hidden, n_pad), lambda i, k: (0, 0)),  # w2
            pl.BlockSpec((1, n_pad), lambda i, k: (0, 0)),       # b2
        ],
        out_specs=pl.BlockSpec((tb, n_pad), lambda i, k: (i, 0)),
        scratch_shapes=[pltpu.VMEM((tb, hidden), jnp.float32)],
        compiler_params=pltpu.CompilerParams(
            dimension_semantics=("parallel", "arbitrary"),  # megacore on batch
            vmem_limit_bytes=vmem_limit,
        ),
    )(x_flat, w_eff, b1_2d, w2_p, b2_p)

    return out[:B, :n_out]


# ----------------------------------------------------------------------------
# Pure-JAX reference mirroring the PyTorch forward (even H/W fast path)
# ----------------------------------------------------------------------------
def get_sr_ratio_ref(x, w1, b1, w2, b2):
    B, C, H, W = x.shape
    p = x.reshape(B, C, 2, H // 2, 2, W // 2).mean(axis=(3, 5))  # (B, C, 2, 2)
    f = p.reshape(B, -1)                                         # (B, 4C)
    h = jnp.maximum(f @ w1.T + b1, 0.0)
    logits = h @ w2.T + b2
    return jax.nn.softmax(logits, axis=1)


if __name__ == "__main__":
    B, C, H, W = 2, 4, 16, 16
    N = 8
    hidden = 128

    key = jax.random.PRNGKey(0)
    kx, k1, k2, k3, k4 = jax.random.split(key, 5)

    x = jax.random.normal(kx, (B, C, H, W), dtype=jnp.float32)

    # Deterministic synthetic parameters (PyTorch-Linear-style uniform bounds).
    fan1 = 4 * C
    bound1 = 1.0 / (fan1 ** 0.5)
    w1 = jax.random.uniform(k1, (hidden, fan1), jnp.float32, -bound1, bound1)
    b1 = jax.random.uniform(k2, (hidden,), jnp.float32, -bound1, bound1)
    bound2 = 1.0 / (hidden ** 0.5)
    w2 = jax.random.uniform(k3, (N, hidden), jnp.float32, -bound2, bound2)
    b2 = jax.random.uniform(k4, (N,), jnp.float32, -bound2, bound2)

    # One-time parameter preparation (load time, not per forward call).
    w_eff, b1_2d, w2_p, b2_p = prepare_params(w1, b1, w2, b2, C, H, W)

    ref = get_sr_ratio_ref(x, w1, b1, w2, b2)

    # Default path (single K block for this small C*H*W).
    fwd = jax.jit(lambda xx: get_sr_ratio_pallas(xx, w_eff, b1_2d, w2_p, b2_p, N))
    out = jax.block_until_ready(fwd(x))
    assert out.shape == (B, N)
    # bf16 MXU path -> relaxed tolerance vs the f32 reference.
    assert jnp.allclose(out, ref, atol=5e-3, rtol=5e-2), (out, ref)
    assert jnp.allclose(jnp.sum(out, axis=1), 1.0, atol=1e-4)

    # Also exercise the K-streamed accumulator path (forced small K tile).
    fwd_k = jax.jit(lambda xx: get_sr_ratio_pallas(
        xx, w_eff, b1_2d, w2_p, b2_p, N, max_k_tile=256))
    out_k = jax.block_until_ready(fwd_k(x))
    assert jnp.allclose(out_k, ref, atol=5e-3, rtol=5e-2), (out_k, ref)
    assert jnp.allclose(jnp.sum(out_k, axis=1), 1.0, atol=1e-4)

    print("KERNEL_OK")
</pallas_src>

<mosaic_0001>
module attributes {stable_mosaic.version = 11 : i64} {
  func.func @_get_sr_ratio_kernel(%arg0: i32, %arg1: i32, %arg2: memref<8x1024xf32, #tpu.memory_space<vmem>>, %arg3: memref<1024x128xbf16, #tpu.memory_space<vmem>>, %arg4: memref<1x128xf32, #tpu.memory_space<vmem>>, %arg5: memref<128x128xbf16, #tpu.memory_space<vmem>>, %arg6: memref<1x128xf32, #tpu.memory_space<vmem>>, %arg7: memref<8x128xf32, #tpu.memory_space<vmem>>, %arg8: memref<8x128xf32, #tpu.memory_space<vmem>>) attributes {dimension_semantics = [#tpu.dimension_semantics<parallel>, #tpu.dimension_semantics<arbitrary>], iteration_bounds = array<i64: 1, 1>, scalar_prefetch = 0 : i64, scratch_operands = 1 : i64, tpu.core_type = #tpu.core_type<tc>, window_params = [{transform_indices = @transform_0, window_bounds = array<i64: 8, 1024>}, {transform_indices = @transform_1, window_bounds = array<i64: 1024, 128>}, {pipeline_mode = #tpu.pipeline_mode<synchronous>, transform_indices = @transform_2, window_bounds = array<i64: 1, 128>}, {pipeline_mode = #tpu.pipeline_mode<synchronous>, transform_indices = @transform_3, window_bounds = array<i64: 128, 128>}, {pipeline_mode = #tpu.pipeline_mode<synchronous>, transform_indices = @transform_4, window_bounds = array<i64: 1, 128>}, {transform_indices = @transform_5, window_bounds = array<i64: 8, 128>}]} {
    %c0_i32 = arith.constant 0 : i32
    %0 = arith.cmpi eq, %arg1, %c0_i32 : i32
    %1 = arith.extui %0 : i1 to i32
    %c0_i32_0 = arith.constant 0 : i32
    %2 = arith.cmpi ne, %1, %c0_i32_0 : i32
    scf.if %2 {
      %cst_10 = arith.constant 0.000000e+00 : f32
      %13 = vector.broadcast %cst_10 : f32 to vector<8x128xf32>
      %c0_11 = arith.constant 0 : index
      %c0_12 = arith.constant 0 : index
      %14 = vector.load %arg8[%c0_11, %c0_12] : memref<8x128xf32, #tpu.memory_space<vmem>>, vector<8x128xf32>
      tpu.vector_store %arg8[%c0_11, %c0_12], %13 {strides = array<i32>} : memref<8x128xf32, #tpu.memory_space<vmem>>, vector<8x128xf32>,
    } else {
    }
    %c0 = arith.constant 0 : index
    %c0_1 = arith.constant 0 : index
    %3 = vector.load %arg8[%c0, %c0_1] : memref<8x128xf32, #tpu.memory_space<vmem>>, vector<8x128xf32>
    %c0_2 = arith.constant 0 : index
    %c0_3 = arith.constant 0 : index
    %4 = vector.load %arg2[%c0_2, %c0_3] : memref<8x1024xf32, #tpu.memory_space<vmem>>, vector<8x1024xf32>
    %5 = arith.truncf %4 : vector<8x1024xf32> to vector<8x1024xbf16>
    %c0_4 = arith.constant 0 : index
    %c0_5 = arith.constant 0 : index
    %6 = vector.load %arg3[%c0_4, %c0_5] : memref<1024x128xbf16, #tpu.memory_space<vmem>>, vector<1024x128xbf16>
    %cst = arith.constant dense<0.000000e+00> : vector<8x128xf32>
    %7 = tpu.matmul %5, %6, %cst {dimension_numbers = #tpu.dot_dimension_numbers<[1], [0], [0], [1], [0, 0, 1, 1], [], []>} : vector<8x1024xbf16>, vector<1024x128xbf16>, vector<8x128xf32> -> vector<8x128xf32>
    %8 = arith.addf %3, %7 : vector<8x128xf32>
    %c0_6 = arith.constant 0 : index
    %c0_7 = arith.constant 0 : index
    %9 = vector.load %arg8[%c0_6, %c0_7] : memref<8x128xf32, #tpu.memory_space<vmem>>, vector<8x128xf32>
    tpu.vector_store %arg8[%c0_6, %c0_7], %8 {strides = array<i32>} : memref<8x128xf32, #tpu.memory_space<vmem>>, vector<8x128xf32>,
    %c0_i32_8 = arith.constant 0 : i32
    %10 = arith.cmpi eq, %arg1, %c0_i32_8 : i32
    %11 = arith.extui %10 : i1 to i32
    %c0_i32_9 = arith.constant 0 : i32
    %12 = arith.cmpi ne, %11, %c0_i32_9 : i32
    scf.if %12 {
      %c0_10 = arith.constant 0 : index
      %c0_11 = arith.constant 0 : index
      %13 = vector.load %arg8[%c0_10, %c0_11] : memref<8x128xf32, #tpu.memory_space<vmem>>, vector<8x128xf32>
      %c0_12 = arith.constant 0 : index
      %c0_13 = arith.constant 0 : index
      %14 = vector.load %arg4[%c0_12, %c0_13] : memref<1x128xf32, #tpu.memory_space<vmem>>, vector<1x128xf32>
      %15 = vector.broadcast %14 : vector<1x128xf32> to vector<8x128xf32>
      %16 = arith.addf %13, %15 : vector<8x128xf32>
      %cst_14 = arith.constant 0.000000e+00 : f32
      %17 = vector.broadcast %cst_14 : f32 to vector<8x128xf32>
      %18 = arith.maximumf %16, %17 : vector<8x128xf32>
      %19 = arith.truncf %18 : vector<8x128xf32> to vector<8x128xbf16>
      %c0_15 = arith.constant 0 : index
      %c0_16 = arith.constant 0 : index
      %20 = vector.load %arg5[%c0_15, %c0_16] : memref<128x128xbf16, #tpu.memory_space<vmem>>, vector<128x128xbf16>
      %cst_17 = arith.constant dense<0.000000e+00> : vector<8x128xf32>
      %21 = tpu.matmul %19, %20, %cst_17 {dimension_numbers = #tpu.dot_dimension_numbers<[1], [0], [0], [1], [0, 0, 1, 1], [], []>} : vector<8x128xbf16>, vector<128x128xbf16>, vector<8x128xf32> -> vector<8x128xf32>
      %c0_18 = arith.constant 0 : index
      %c0_19 = arith.constant 0 : index
      %22 = vector.load %arg6[%c0_18, %c0_19] : memref<1x128xf32, #tpu.memory_space<vmem>>, vector<1x128xf32>
      %23 = vector.broadcast %22 : vector<1x128xf32> to vector<8x128xf32>
      %24 = arith.addf %21, %23 : vector<8x128xf32>
      %cst_20 = arith.constant dense<0xFF800000> : vector<8xf32>
      %25 = vector.multi_reduction <maximumf>, %24, %cst_20 [1] : vector<8x128xf32> to vector<8xf32>
      %26 = vector.shape_cast %25 : vector<8xf32> to vector<8x1xf32>
      %27 = vector.broadcast %26 : vector<8x1xf32> to vector<8x128xf32>
      %28 = arith.subf %24, %27 : vector<8x128xf32>
      %29 = math.exp %28 : vector<8x128xf32>
      %cst_21 = arith.constant dense<0.000000e+00> : vector<8xf32>
      %30 = vector.multi_reduction <add>, %29, %cst_21 [1] : vector<8x128xf32> to vector<8xf32>
      %31 = vector.shape_cast %30 : vector<8xf32> to vector<8x1xf32>
      %32 = tpu.reciprocal %31 {approx = true} : vector<8x1xf32> -> vector<8x1xf32>
      %33 = arith.mulf %31, %32 : vector<8x1xf32>
      %cst_22 = arith.constant 2.000000e+00 : f32
      %34 = vector.broadcast %cst_22 : f32 to vector<8x1xf32>
      %35 = arith.subf %34, %33 : vector<8x1xf32>
      %36 = arith.mulf %32, %35 : vector<8x1xf32>
      %37 = vector.broadcast %36 : vector<8x1xf32> to vector<8x128xf32>
      %38 = arith.mulf %29, %37 : vector<8x128xf32>
      %c0_23 = arith.constant 0 : index
      %c0_24 = arith.constant 0 : index
      %39 = vector.load %arg7[%c0_23, %c0_24] : memref<8x128xf32, #tpu.memory_space<vmem>>, vector<8x128xf32>
      tpu.vector_store %arg7[%c0_23, %c0_24], %38 {strides = array<i32>} : memref<8x128xf32, #tpu.memory_space<vmem>>, vector<8x128xf32>,
    } else {
    }
    return
  }
  func.func @transform_0(%arg0: i32, %arg1: i32) -> (i32, i32) {
    %c0_i32 = arith.constant 0 : i32
    return %arg0, %arg1 : i32, i32
  }
  func.func @transform_1(%arg0: i32, %arg1: i32) -> (i32, i32) {
    %c0_i32 = arith.constant 0 : i32
    %c0_i32_0 = arith.constant 0 : i32
    return %arg1, %c0_i32 : i32, i32
  }
  func.func @transform_2(%arg0: i32, %arg1: i32) -> (i32, i32) {
    %c0_i32 = arith.constant 0 : i32
    %c0_i32_0 = arith.constant 0 : i32
    %c0_i32_1 = arith.constant 0 : i32
    return %c0_i32, %c0_i32_0 : i32, i32
  }
  func.func @transform_3(%arg0: i32, %arg1: i32) -> (i32, i32) {
    %c0_i32 = arith.constant 0 : i32
    %c0_i32_0 = arith.constant 0 : i32
    %c0_i32_1 = arith.constant 0 : i32
    return %c0_i32, %c0_i32_0 : i32, i32
  }
  func.func @transform_4(%arg0: i32, %arg1: i32) -> (i32, i32) {
    %c0_i32 = arith.constant 0 : i32
    %c0_i32_0 = arith.constant 0 : i32
    %c0_i32_1 = arith.constant 0 : i32
    return %c0_i32, %c0_i32_0 : i32, i32
  }
  func.func @transform_5(%arg0: i32, %arg1: i32) -> (i32, i32) {
    %c0_i32 = arith.constant 0 : i32
    %c0_i32_0 = arith.constant 0 : i32
    return %arg0, %c0_i32 : i32, i32
  }
}

</mosaic_0001>

<llo_original>
// kernel: _lambda_.1
$region0: #{_lambda_.1}
  #allocation0 [shape = 'u32[]', space=smem, size = 0x4, offset = 0x4, fixed_abs, tag = 'smem constant byte address 0x4 - core index']
  #allocation1 [shape = 'u32[144,128]{1,0:T(1,128)}', space=vmem, size = 0x12000, scoped, tag = 'internal scratch']
  #allocation2 [shape = 'f32[8,128]{1,0:T(8,128)}', space=vmem, size = 0x1000, scoped, tag = 'scratch operand']
  %s0 = inlined_call_operand.vmem [shape: f32[8,1024], index: 0, kind: input, shape index: {}]
  %s1 = inlined_call_operand.hbm [shape: bf16[1024,128], index: 1, kind: input, shape index: {}]
  %s2 = inlined_call_operand.vmem [shape: f32[1,128], index: 2, kind: input, shape index: {}]
  %s3 = inlined_call_operand.vmem [shape: bf16[128,128], index: 3, kind: input, shape index: {}]
  %s4 = inlined_call_operand.vmem [shape: f32[1,128], index: 4, kind: input, shape index: {}]
  %s5 = inlined_call_operand.vmem [shape: f32[8,128], index: 5, kind: output, shape index: {}]
  %s6 = sld [smem:[#allocation0]]
  $region42: #{_lambda_.1} parent=0
    _
  %s8 = ssub.s32 1, %s6
  %s9 = scalar_select 0, %s8, %s6
  $region1: #{_lambda_.1} parent=0
    #allocation3 [shape = 'u8[262144]{0}', space=vmem, size = 0x40000, scoped, tag = 'input window, operand 1, single buffered']
    #allocation4 [shape = 's32[1]{0}', space=sflag, size = 0x4, scoped, tag = 'scoped memory for _lambda_.1']
    %10 = vsyncpa [#allocation4], 0
    // Predicated region
    $region2: #{_lambda_.1} parent=1 // pred_check
      _
    $region3: #{_lambda_.1} parent=1 // pred_check_branch
      %12 = sbr.rel (0) target = $region5
    $region4: #{_lambda_.1} parent=1 // pred_region
      _
    $region5: #{_lambda_.1} parent=1 // pred_fallthru
      _
    // Predicated region
    $region6: #{_lambda_.1} parent=1 // pred_check
      _
    $region7: #{_lambda_.1} parent=1 // pred_check_branch
      %14 = sbr.rel (0) target = $region9
    $region8: #{_lambda_.1} parent=1 // pred_region
      %s16 = ssub.s32 8192, 8192
      %17 = vsyncadd [#allocation4], %s16
      %s18 = sshll.u32 [#allocation3], 4
      %s19 = int_to_ptr.vmem [resolvable:$true] %s18
      %24 = dma.hbm_to_vmem [thread:$0]  %s1, 8192, %s19, [#allocation4], 64, 64, 4
    $region9: #{_lambda_.1} parent=1 // pred_fallthru
      _
    // Predicated region
    $region10: #{_lambda_.1} parent=1 // pred_check
      _
    $region11: #{_lambda_.1} parent=1 // pred_check_branch
      %26 = sbr.rel (0) target = $region13
    $region12: #{_lambda_.1} parent=1 // pred_region
      _
    $region13: #{_lambda_.1} parent=1 // pred_fallthru
      _
    // Predicated region
    $region14: #{_lambda_.1} parent=1 // pred_check
      _
    $region15: #{_lambda_.1} parent=1 // pred_check_branch
      %28 = sbr.rel (0) target = $region17
    $region16: #{_lambda_.1} parent=1 // pred_region
      _
    $region17: #{_lambda_.1} parent=1 // pred_fallthru
      _
    // Predicated region
    $region18: #{_lambda_.1} parent=1 // pred_check
      _
    $region19: #{_lambda_.1} parent=1 // pred_check_branch
      %30 = sbr.rel (0) target = $region21
    $region20: #{_lambda_.1} parent=1 // pred_region
      _
    $region21: #{_lambda_.1} parent=1 // pred_fallthru
      _
    // Predicated region
    $region22: #{_lambda_.1} parent=1 // pred_check
      _
    $region23: #{_lambda_.1} parent=1 // pred_check_branch
      %32 = sbr.rel (0) target = $region25
    $region24: #{_lambda_.1} parent=1 // pred_region
      %33 = dma.done [#allocation4], 8192
    $region25: #{_lambda_.1} parent=1 // pred_fallthru
      _
    %p35 = scmp.eq.s32.totalorder 0, 0
    // Predicated region
    $region26: #{_lambda_.1} parent=1 // pred_check
      %p36 = pneg %p35
    $region27: #{_lambda_.1} parent=1 // pred_check_branch
      %38 = sbr.rel (%p36) target = $region29
    $region28: #{_lambda_.1} parent=1 // pred_region
      %39 = vst [vmem:[#allocation2] sm:$0xff] 0.0
    $region29: #{_lambda_.1} parent=1 // pred_fallthru
      _
    %v40 = vld [vmem:[#allocation2] sm:$0xff]
    %v41 = vld [vmem:[%s0] sm:$0xff]
    %v42 = vld [vmem:[%s0 + $0x8] sm:$0xff]
    %v43 = vld [vmem:[%s0 + $0x10] sm:$0xff]
    %v44 = vld [vmem:[%s0 + $0x18] sm:$0xff]
    %v45 = vld [vmem:[%s0 + $0x20] sm:$0xff]
    %v46 = vld [vmem:[%s0 + $0x28] sm:$0xff]
    %v47 = vld [vmem:[%s0 + $0x30] sm:$0xff]
    %v48 = vld [vmem:[%s0 + $0x38] sm:$0xff]
    %v49 = vpack.c.bf16 %v41, %v41
    %v50 = vpack.c.bf16 %v42, %v42
    %v51 = vpack.c.bf16 %v43, %v43
    %v52 = vpack.c.bf16 %v44, %v44
    %v53 = vpack.c.bf16 %v45, %v45
    %v54 = vpack.c.bf16 %v46, %v46
    %v55 = vpack.c.bf16 %v47, %v47
    %v56 = vpack.c.bf16 %v48, %v48
    %v57 = vld [vmem:[#allocation3] sm:$0xf]
    %v58 = vld [vmem:[#allocation3 + $0x4] sm:$0xf]
    %v59 = vld [vmem:[#allocation3 + $0x8] sm:$0xf]
    %v60 = vld [vmem:[#allocation3 + $0xc] sm:$0xf]
    %v61 = vld [vmem:[#allocation3 + $0x10] sm:$0xf]
    %v62 = vld [vmem:[#allocation3 + $0x14] sm:$0xf]
    %v63 = vld [vmem:[#allocation3 + $0x18] sm:$0xf]
    %v64 = vld [vmem:[#allocation3 + $0x1c] sm:$0xf]
    %v65 = vld [vmem:[#allocation3 + $0x20] sm:$0xf]
    %v66 = vld [vmem:[#allocation3 + $0x24] sm:$0xf]
    %v67 = vld [vmem:[#allocation3 + $0x28] sm:$0xf]
    %v68 = vld [vmem:[#allocation3 + $0x2c] sm:$0xf]
    %v69 = vld [vmem:[#allocation3 + $0x30] sm:$0xf]
    %v70 = vld [vmem:[#allocation3 + $0x34] sm:$0xf]
    %v71 = vld [vmem:[#allocation3 + $0x38] sm:$0xf]
    %v72 = vld [vmem:[#allocation3 + $0x3c] sm:$0xf]
    %v73 = vld [vmem:[#allocation3 + $0x40] sm:$0xf]
    %v74 = vld [vmem:[#allocation3 + $0x44] sm:$0xf]
    %v75 = vld [vmem:[#allocation3 + $0x48] sm:$0xf]
    %v76 = vld [vmem:[#allocation3 + $0x4c] sm:$0xf]
    %v77 = vld [vmem:[#allocation3 + $0x50] sm:$0xf]
    %v78 = vld [vmem:[#allocation3 + $0x54] sm:$0xf]
    %v79 = vld [vmem:[#allocation3 + $0x58] sm:$0xf]
    %v80 = vld [vmem:[#allocation3 + $0x5c] sm:$0xf]
    %v81 = vld [vmem:[#allocation3 + $0x60] sm:$0xf]
    %v82 = vld [vmem:[#allocation3 + $0x64] sm:$0xf]
    %v83 = vld [vmem:[#allocation3 + $0x68] sm:$0xf]
    %v84 = vld [vmem:[#allocation3 + $0x6c] sm:$0xf]
    %v85 = vld [vmem:[#allocation3 + $0x70] sm:$0xf]
    %v86 = vld [vmem:[#allocation3 + $0x74] sm:$0xf]
    %v87 = vld [vmem:[#allocation3 + $0x78] sm:$0xf]
    %v88 = vld [vmem:[#allocation3 + $0x7c] sm:$0xf]
    %v89 = vld [vmem:[#allocation3 + $0x80] sm:$0xf]
    %v90 = vld [vmem:[#allocation3 + $0x84] sm:$0xf]
    %v91 = vld [vmem:[#allocation3 + $0x88] sm:$0xf]
    %v92 = vld [vmem:[#allocation3 + $0x8c] sm:$0xf]
    %v93 = vld [vmem:[#allocation3 + $0x90] sm:$0xf]
    %v94 = vld [vmem:[#allocation3 + $0x94] sm:$0xf]
    %v95 = vld [vmem:[#allocation3 + $0x98] sm:$0xf]
    %v96 = vld [vmem:[#allocation3 + $0x9c] sm:$0xf]
    %v97 = vld [vmem:[#allocation3 + $0xa0] sm:$0xf]
    %v98 = vld [vmem:[#allocation3 + $0xa4] sm:$0xf]
    %v99 = vld [vmem:[#allocation3 + $0xa8] sm:$0xf]
    %v100 = vld [vmem:[#allocation3 + $0xac] sm:$0xf]
    %v101 = vld [vmem:[#allocation3 + $0xb0] sm:$0xf]
    %v102 = vld [vmem:[#allocation3 + $0xb4] sm:$0xf]
    %v103 = vld [vmem:[#allocation3 + $0xb8] sm:$0xf]
    %v104 = vld [vmem:[#allocation3 + $0xbc] sm:$0xf]
    %v105 = vld [vmem:[#allocation3 + $0xc0] sm:$0xf]
    %v106 = vld [vmem:[#allocation3 + $0xc4] sm:$0xf]
    %v107 = vld [vmem:[#allocation3 + $0xc8] sm:$0xf]
    %v108 = vld [vmem:[#allocation3 + $0xcc] sm:$0xf]
    %v109 = vld [vmem:[#allocation3 + $0xd0] sm:$0xf]
    %v110 = vld [vmem:[#allocation3 + $0xd4] sm:$0xf]
    %v111 = vld [vmem:[#allocation3 + $0xd8] sm:$0xf]
    %v112 = vld [vmem:[#allocation3 + $0xdc] sm:$0xf]
    %v113 = vld [vmem:[#allocation3 + $0xe0] sm:$0xf]
    %v114 = vld [vmem:[#allocation3 + $0xe4] sm:$0xf]
    %v115 = vld [vmem:[#allocation3 + $0xe8] sm:$0xf]
    %v116 = vld [vmem:[#allocation3 + $0xec] sm:$0xf]
    %v117 = vld [vmem:[#allocation3 + $0xf0] sm:$0xf]
    %v118 = vld [vmem:[#allocation3 + $0xf4] sm:$0xf]
    %v119 = vld [vmem:[#allocation3 + $0xf8] sm:$0xf]
    %v120 = vld [vmem:[#allocation3 + $0xfc] sm:$0xf]
    %v121 = vld [vmem:[#allocation3 + $0x100] sm:$0xf]
    %v122 = vld [vmem:[#allocation3 + $0x104] sm:$0xf]
    %v123 = vld [vmem:[#allocation3 + $0x108] sm:$0xf]
    %v124 = vld [vmem:[#allocation3 + $0x10c] sm:$0xf]
    %v125 = vld [vmem:[#allocation3 + $0x110] sm:$0xf]
    %v126 = vld [vmem:[#allocation3 + $0x114] sm:$0xf]
    %v127 = vld [vmem:[#allocation3 + $0x118] sm:$0xf]
    %v128 = vld [vmem:[#allocation3 + $0x11c] sm:$0xf]
    %v129 = vld [vmem:[#allocation3 + $0x120] sm:$0xf]
    %v130 = vld [vmem:[#allocation3 + $0x124] sm:$0xf]
    %v131 = vld [vmem:[#allocation3 + $0x128] sm:$0xf]
    %v132 = vld [vmem:[#allocation3 + $0x12c] sm:$0xf]
    %v133 = vld [vmem:[#allocation3 + $0x130] sm:$0xf]
    %v134 = vld [vmem:[#allocation3 + $0x134] sm:$0xf]
    %v135 = vld [vmem:[#allocation3 + $0x138] sm:$0xf]
    %v136 = vld [vmem:[#allocation3 + $0x13c] sm:$0xf]
    %v137 = vld [vmem:[#allocation3 + $0x140] sm:$0xf]
    %v138 = vld [vmem:[#allocation3 + $0x144] sm:$0xf]
    %v139 = vld [vmem:[#allocation3 + $0x148] sm:$0xf]
    %v140 = vld [vmem:[#allocation3 + $0x14c] sm:$0xf]
    %v141 = vld [vmem:[#allocation3 + $0x150] sm:$0xf]
    %v142 = vld [vmem:[#allocation3 + $0x154] sm:$0xf]
    %v143 = vld [vmem:[#allocation3 + $0x158] sm:$0xf]
    %v144 = vld [vmem:[#allocation3 + $0x15c] sm:$0xf]
    %v145 = vld [vmem:[#allocation3 + $0x160] sm:$0xf]
    %v146 = vld [vmem:[#allocation3 + $0x164] sm:$0xf]
    %v147 = vld [vmem:[#allocation3 + $0x168] sm:$0xf]
    %v148 = vld [vmem:[#allocation3 + $0x16c] sm:$0xf]
    %v149 = vld [vmem:[#allocation3 + $0x170] sm:$0xf]
    %v150 = vld [vmem:[#allocation3 + $0x174] sm:$0xf]
    %v151 = vld [vmem:[#allocation3 + $0x178] sm:$0xf]
    %v152 = vld [vmem:[#allocation3 + $0x17c] sm:$0xf]
    %v153 = vld [vmem:[#allocation3 + $0x180] sm:$0xf]
    %v154 = vld [vmem:[#allocation3 + $0x184] sm:$0xf]
    %v155 = vld [vmem:[#allocation3 + $0x188] sm:$0xf]
    %v156 = vld [vmem:[#allocation3 + $0x18c] sm:$0xf]
    %v157 = vld [vmem:[#allocation3 + $0x190] sm:$0xf]
    %v158 = vld [vmem:[#allocation3 + $0x194] sm:$0xf]
    %v159 = vld [vmem:[#allocation3 + $0x198] sm:$0xf]
    %v160 = vld [vmem:[#allocation3 + $0x19c] sm:$0xf]
    %v161 = vld [vmem:[#allocation3 + $0x1a0] sm:$0xf]
    %v162 = vld [vmem:[#allocation3 + $0x1a4] sm:$0xf]
    %v163 = vld [vmem:[#allocation3 + $0x1a8] sm:$0xf]
    %v164 = vld [vmem:[#allocation3 + $0x1ac] sm:$0xf]
    %v165 = vld [vmem:[#allocation3 + $0x1b0] sm:$0xf]
    %v166 = vld [vmem:[#allocation3 + $0x1b4] sm:$0xf]
    %v167 = vld [vmem:[#allocation3 + $0x1b8] sm:$0xf]
    %v168 = vld [vmem:[#allocation3 + $0x1bc] sm:$0xf]
    %v169 = vld [vmem:[#allocation3 + $0x1c0] sm:$0xf]
    %v170 = vld [vmem:[#allocation3 + $0x1c4] sm:$0xf]
    %v171 = vld [vmem:[#allocation3 + $0x1c8] sm:$0xf]
    %v172 = vld [vmem:[#allocation3 + $0x1cc] sm:$0xf]
    %v173 = vld [vmem:[#allocation3 + $0x1d0] sm:$0xf]
    %v174 = vld [vmem:[#allocation3 + $0x1d4] sm:$0xf]
    %v175 = vld [vmem:[#allocation3 + $0x1d8] sm:$0xf]
    %v176 = vld [vmem:[#allocation3 + $0x1dc] sm:$0xf]
    %v177 = vld [vmem:[#allocation3 + $0x1e0] sm:$0xf]
    %v178 = vld [vmem:[#allocation3 + $0x1e4] sm:$0xf]
    %v179 = vld [vmem:[#allocation3 + $0x1e8] sm:$0xf]
    %v180 = vld [vmem:[#allocation3 + $0x1ec] sm:$0xf]
    %v181 = vld [vmem:[#allocation3 + $0x1f0] sm:$0xf]
    %v182 = vld [vmem:[#allocation3 + $0x1f4] sm:$0xf]
    %v183 = vld [vmem:[#allocation3 + $0x1f8] sm:$0xf]
    %v184 = vld [vmem:[#allocation3 + $0x1fc] sm:$0xf]
    %v313 = vunpack.c.l.b16 %v57
    %v314 = vunpack.c.l.b16 %v58
    %v315 = vunpack.c.l.b16 %v59
    %v316 = vunpack.c.l.b16 %v60
    %v317 = vunpack.c.l.b16 %v61
    %v318 = vunpack.c.l.b16 %v62
    %v319 = vunpack.c.l.b16 %v63
    %v320 = vunpack.c.l.b16 %v64
    %v321 = vunpack.c.l.b16 %v65
    %v322 = vunpack.c.l.b16 %v66
    %v323 = vunpack.c.l.b16 %v67
    %v324 = vunpack.c.l.b16 %v68
    %v325 = vunpack.c.l.b16 %v69
    %v326 = vunpack.c.l.b16 %v70
    %v327 = vunpack.c.l.b16 %v71
    %v328 = vunpack.c.l.b16 %v72
    %v329 = vunpack.c.l.b16 %v73
    %v330 = vunpack.c.l.b16 %v74
    %v331 = vunpack.c.l.b16 %v75
    %v332 = vunpack.c.l.b16 %v76
    %v333 = vunpack.c.l.b16 %v77
    %v334 = vunpack.c.l.b16 %v78
    %v335 = vunpack.c.l.b16 %v79
    %v336 = vunpack.c.l.b16 %v80
    %v337 = vunpack.c.l.b16 %v81
    %v338 = vunpack.c.l.b16 %v82
    %v339 = vunpack.c.l.b16 %v83
    %v340 = vunpack.c.l.b16 %v84
    %v341 = vunpack.c.l.b16 %v85
    %v342 = vunpack.c.l.b16 %v86
    %v343 = vunpack.c.l.b16 %v87
    %v344 = vunpack.c.l.b16 %v88
    %v345 = vunpack.c.l.b16 %v89
    %v346 = vunpack.c.l.b16 %v90
    %v347 = vunpack.c.l.b16 %v91
    %v348 = vunpack.c.l.b16 %v92
    %v349 = vunpack.c.l.b16 %v93
    %v350 = vunpack.c.l.b16 %v94
    %v351 = vunpack.c.l.b16 %v95
    %v352 = vunpack.c.l.b16 %v96
    %v353 = vunpack.c.l.b16 %v97
    %v354 = vunpack.c.l.b16 %v98
    %v355 = vunpack.c.l.b16 %v99
    %v356 = vunpack.c.l.b16 %v100
    %v357 = vunpack.c.l.b16 %v101
    %v358 = vunpack.c.l.b16 %v102
    %v359 = vunpack.c.l.b16 %v103
    %v360 = vunpack.c.l.b16 %v104
    %v361 = vunpack.c.l.b16 %v105
    %v362 = vunpack.c.l.b16 %v106
    %v363 = vunpack.c.l.b16 %v107
    %v364 = vunpack.c.l.b16 %v108
    %v365 = vunpack.c.l.b16 %v109
    %v366 = vunpack.c.l.b16 %v110
    %v367 = vunpack.c.l.b16 %v111
    %v368 = vunpack.c.l.b16 %v112
    %v369 = vunpack.c.l.b16 %v113
    %v370 = vunpack.c.l.b16 %v114
    %v371 = vunpack.c.l.b16 %v115
    %v372 = vunpack.c.l.b16 %v116
    %v373 = vunpack.c.l.b16 %v117
    %v374 = vunpack.c.l.b16 %v118
    %v375 = vunpack.c.l.b16 %v119
    %v376 = vunpack.c.l.b16 %v120
    %v377 = vunpack.c.l.b16 %v121
    %v378 = vunpack.c.l.b16 %v122
    %v379 = vunpack.c.l.b16 %v123
    %v380 = vunpack.c.l.b16 %v124
    %v381 = vunpack.c.l.b16 %v125
    %v382 = vunpack.c.l.b16 %v126
    %v383 = vunpack.c.l.b16 %v127
    %v384 = vunpack.c.l.b16 %v128
    %v385 = vunpack.c.l.b16 %v129
    %v386 = vunpack.c.l.b16 %v130
    %v387 = vunpack.c.l.b16 %v131
    %v388 = vunpack.c.l.b16 %v132
    %v389 = vunpack.c.l.b16 %v133
    %v390 = vunpack.c.l.b16 %v134
    %v391 = vunpack.c.l.b16 %v135
    %v392 = vunpack.c.l.b16 %v136
    %v393 = vunpack.c.l.b16 %v137
    %v394 = vunpack.c.l.b16 %v138
    %v395 = vunpack.c.l.b16 %v139
    %v396 = vunpack.c.l.b16 %v140
    %v397 = vunpack.c.l.b16 %v141
    %v398 = vunpack.c.l.b16 %v142
    %v399 = vunpack.c.l.b16 %v143
    %v400 = vunpack.c.l.b16 %v144
    %v401 = vunpack.c.l.b16 %v145
    %v402 = vunpack.c.l.b16 %v146
    %v403 = vunpack.c.l.b16 %v147
    %v404 = vunpack.c.l.b16 %v148
    %v405 = vunpack.c.l.b16 %v149
    %v406 = vunpack.c.l.b16 %v150
    %v407 = vunpack.c.l.b16 %v151
    %v408 = vunpack.c.l.b16 %v152
    %v409 = vunpack.c.l.b16 %v153
    %v410 = vunpack.c.l.b16 %v154
    %v411 = vunpack.c.l.b16 %v155
    %v412 = vunpack.c.l.b16 %v156
    %v413 = vunpack.c.l.b16 %v157
    %v414 = vunpack.c.l.b16 %v158
    %v415 = vunpack.c.l.b16 %v159
    %v416 = vunpack.c.l.b16 %v160
    %v417 = vunpack.c.l.b16 %v161
    %v418 = vunpack.c.l.b16 %v162
    %v419 = vunpack.c.l.b16 %v163
    %v420 = vunpack.c.l.b16 %v164
    %v421 = vunpack.c.l.b16 %v165
    %v422 = vunpack.c.l.b16 %v166
    %v423 = vunpack.c.l.b16 %v167
    %v424 = vunpack.c.l.b16 %v168
    %v425 = vunpack.c.l.b16 %v169
    %v426 = vunpack.c.l.b16 %v170
    %v427 = vunpack.c.l.b16 %v171
    %v428 = vunpack.c.l.b16 %v172
    %v429 = vunpack.c.l.b16 %v173
    %v430 = vunpack.c.l.b16 %v174
    %v431 = vunpack.c.l.b16 %v175
    %v432 = vunpack.c.l.b16 %v176
    %v433 = vunpack.c.l.b16 %v177
    %v434 = vunpack.c.l.b16 %v178
    %v435 = vunpack.c.l.b16 %v179
    %v436 = vunpack.c.l.b16 %v180
    %v437 = vunpack.c.l.b16 %v181
    %v438 = vunpack.c.l.b16 %v182
    %v439 = vunpack.c.l.b16 %v183
    %v440 = vunpack.c.l.b16 %v184
    %v441 = vpack.c.b16 %v314, %v313
    %v442 = vpack.c.b16 %v316, %v315
    %v443 = vpack.c.b16 %v318, %v317
    %v444 = vpack.c.b16 %v320, %v319
    %v445 = vpack.c.b16 %v322, %v321
    %v446 = vpack.c.b16 %v324, %v323
    %v447 = vpack.c.b16 %v326, %v325
    %v448 = vpack.c.b16 %v328, %v327
    %v449 = vpack.c.b16 %v330, %v329
    %v450 = vpack.c.b16 %v332, %v331
    %v451 = vpack.c.b16 %v334, %v333
    %v452 = vpack.c.b16 %v336, %v335
    %v453 = vpack.c.b16 %v338, %v337
    %v454 = vpack.c.b16 %v340, %v339
    %v455 = vpack.c.b16 %v342, %v341
    %v456 = vpack.c.b16 %v344, %v343
    %v457 = vpack.c.b16 %v346, %v345
    %v458 = vpack.c.b16 %v348, %v347
    %v459 = vpack.c.b16 %v350, %v349
    %v460 = vpack.c.b16 %v352, %v351
    %v461 = vpack.c.b16 %v354, %v353
    %v462 = vpack.c.b16 %v356, %v355
    %v463 = vpack.c.b16 %v358, %v357
    %v464 = vpack.c.b16 %v360, %v359
    %v465 = vpack.c.b16 %v362, %v361
    %v466 = vpack.c.b16 %v364, %v363
    %v467 = vpack.c.b16 %v366, %v365
    %v468 = vpack.c.b16 %v368, %v367
    %v469 = vpack.c.b16 %v370, %v369
    %v470 = vpack.c.b16 %v372, %v371
    %v471 = vpack.c.b16 %v374, %v373
    %v472 = vpack.c.b16 %v376, %v375
    %v473 = vpack.c.b16 %v378, %v377
    %v474 = vpack.c.b16 %v380, %v379
    %v475 = vpack.c.b16 %v382, %v381
    %v476 = vpack.c.b16 %v384, %v383
    %v477 = vpack.c.b16 %v386, %v385
    %v478 = vpack.c.b16 %v388, %v387
    %v479 = vpack.c.b16 %v390, %v389
    %v480 = vpack.c.b16 %v392, %v391
    %v481 = vpack.c.b16 %v394, %v393
    %v482 = vpack.c.b16 %v396, %v395
    %v483 = vpack.c.b16 %v398, %v397
    %v484 = vpack.c.b16 %v400, %v399
    %v485 = vpack.c.b16 %v402, %v401
    %v486 = vpack.c.b16 %v404, %v403
    %v487 = vpack.c.b16 %v406, %v405
    %v488 = vpack.c.b16 %v408, %v407
    %v489 = vpack.c.b16 %v410, %v409
    %v490 = vpack.c.b16 %v412, %v411
    %v491 = vpack.c.b16 %v414, %v413
    %v492 = vpack.c.b16 %v416, %v415
    %v493 = vpack.c.b16 %v418, %v417
    %v494 = vpack.c.b16 %v420, %v419
    %v495 = vpack.c.b16 %v422, %v421
    %v496 = vpack.c.b16 %v424, %v423
    %v497 = vpack.c.b16 %v426, %v425
    %v498 = vpack.c.b16 %v428, %v427
    %v499 = vpack.c.b16 %v430, %v429
    %v500 = vpack.c.b16 %v432, %v431
    %v501 = vpack.c.b16 %v434, %v433
    %v502 = vpack.c.b16 %v436, %v435
    %v503 = vpack.c.b16 %v438, %v437
    %v504 = vpack.c.b16 %v440, %v439
    %569 = vmatprep.subr.bf16.mxu0 0
    %570 = vmatpush1.bf16.msra.mxu0 %v441
    %571 = vmatprep.subr.bf16.mxu0 0
    %572 = vmatpush1.bf16.msra.mxu0 %v442
    %573 = vmatprep.subr.bf16.mxu0 0
    %574 = vmatpush1.bf16.msra.mxu0 %v443
    %575 = vmatprep.subr.bf16.mxu0 0
    %576 = vmatpush1.bf16.msra.mxu0 %v444
    %577 = vmatprep.subr.bf16.mxu0 0
    %578 = vmatpush1.bf16.msra.mxu0 %v445
    %579 = vmatprep.subr.bf16.mxu0 0
    %580 = vmatpush1.bf16.msra.mxu0 %v446
    %581 = vmatprep.subr.bf16.mxu0 0
    %582 = vmatpush1.bf16.msra.mxu0 %v447
    %583 = vmatprep.subr.bf16.mxu0 0
    %584 = vmatpush1.bf16.msra.mxu0 %v448
    %585 = vmatprep.subr.bf16.mxu0 0
    %586 = vmatpush1.bf16.msra.mxu0 %v449
    %587 = vmatprep.subr.bf16.mxu0 0
    %588 = vmatpush1.bf16.msra.mxu0 %v450
    %589 = vmatprep.subr.bf16.mxu0 0
    %590 = vmatpush1.bf16.msra.mxu0 %v451
    %591 = vmatprep.subr.bf16.mxu0 0
    %592 = vmatpush1.bf16.msra.mxu0 %v452
    %593 = vmatprep.subr.bf16.mxu0 0
    %594 = vmatpush1.bf16.msra.mxu0 %v453
    %595 = vmatprep.subr.bf16.mxu0 0
    %596 = vmatpush1.bf16.msra.mxu0 %v454
    %597 = vmatprep.subr.bf16.mxu0 0
    %598 = vmatpush1.bf16.msra.mxu0 %v455
    %599 = vmatprep.subr.bf16.mxu0 0
    %600 = vmatpush1.bf16.msra.mxu0 %v456
    %601 = vmatprep.mubr.bf16.mxu0 %v50
    %602 = vmatmul.mubr.bf16.gmra.mrb[0].mxu0 %v49
    %v603 = vpop.f32.mrb[0].mxu0
    %v604 = vadd.f32 0.0, %v603
    %v605 = vpop.f32.mrb[0].mxu0
    %v606 = vpop.f32.mrb[0].mxu0
    %v607 = vpop.f32.mrb[0].mxu0
    %608 = vdwg.mxu0
    %609 = vmatprep.subr.bf16.mxu0 0
    %610 = vmatpush1.bf16.msra.mxu0 %v457
    %611 = vmatprep.subr.bf16.mxu0 0
    %612 = vmatpush1.bf16.msra.mxu0 %v458
    %613 = vmatprep.subr.bf16.mxu0 0
    %614 = vmatpush1.bf16.msra.mxu0 %v459
    %615 = vmatprep.subr.bf16.mxu0 0
    %616 = vmatpush1.bf16.msra.mxu0 %v460
    %617 = vmatprep.subr.bf16.mxu0 0
    %618 = vmatpush1.bf16.msra.mxu0 %v461
    %619 = vmatprep.subr.bf16.mxu0 0
    %620 = vmatpush1.bf16.msra.mxu0 %v462
    %621 = vmatprep.subr.bf16.mxu0 0
    %622 = vmatpush1.bf16.msra.mxu0 %v463
    %623 = vmatprep.subr.bf16.mxu0 0
    %624 = vmatpush1.bf16.msra.mxu0 %v464
    %625 = vmatprep.subr.bf16.mxu0 0
    %626 = vmatpush1.bf16.msra.mxu0 %v465
    %627 = vmatprep.subr.bf16.mxu0 0
    %628 = vmatpush1.bf16.msra.mxu0 %v466
    %629 = vmatprep.subr.bf16.mxu0 0
    %630 = vmatpush1.bf16.msra.mxu0 %v467
    %631 = vmatprep.subr.bf16.mxu0 0
    %632 = vmatpush1.bf16.msra.mxu0 %v468
    %633 = vmatprep.subr.bf16.mxu0 0
    %634 = vmatpush1.bf16.msra.mxu0 %v469
    %635 = vmatprep.subr.bf16.mxu0 0
    %636 = vmatpush1.bf16.msra.mxu0 %v470
    %637 = vmatprep.subr.bf16.mxu0 0
    %638 = vmatpush1.bf16.msra.mxu0 %v471
    %639 = vmatprep.subr.bf16.mxu0 0
    %640 = vmatpush1.bf16.msra.mxu0 %v472
    %641 = vmatprep.mubr.bf16.mxu0 %v52
    %642 = vmatmul.mubr.bf16.gmra.mrb[0].mxu0 %v51
    %v643 = vpop.f32.mrb[0].mxu0
    %v644 = vadd.f32 %v604, %v643
    %v645 = vpop.f32.mrb[0].mxu0
    %v646 = vpop.f32.mrb[0].mxu0
    %v647 = vpop.f32.mrb[0].mxu0
    %648 = vdwg.mxu0
    %649 = vmatprep.subr.bf16.mxu0 0
    %650 = vmatpush1.bf16.msra.mxu0 %v473
    %651 = vmatprep.subr.bf16.mxu0 0
    %652 = vmatpush1.bf16.msra.mxu0 %v474
    %653 = vmatprep.subr.bf16.mxu0 0
    %654 = vmatpush1.bf16.msra.mxu0 %v475
    %655 = vmatprep.subr.bf16.mxu0 0
    %656 = vmatpush1.bf16.msra.mxu0 %v476
    %657 = vmatprep.subr.bf16.mxu0 0
    %658 = vmatpush1.bf16.msra.mxu0 %v477
    %659 = vmatprep.subr.bf16.mxu0 0
    %660 = vmatpush1.bf16.msra.mxu0 %v478
    %661 = vmatprep.subr.bf16.mxu0 0
    %662 = vmatpush1.bf16.msra.mxu0 %v479
    %663 = vmatprep.subr.bf16.mxu0 0
    %664 = vmatpush1.bf16.msra.mxu0 %v480
    %665 = vmatprep.subr.bf16.mxu0 0
    %666 = vmatpush1.bf16.msra.mxu0 %v481
    %667 = vmatprep.subr.bf16.mxu0 0
    %668 = vmatpush1.bf16.msra.mxu0 %v482
    %669 = vmatprep.subr.bf16.mxu0 0
    %670 = vmatpush1.bf16.msra.mxu0 %v483
    %671 = vmatprep.subr.bf16.mxu0 0
    %672 = vmatpush1.bf16.msra.mxu0 %v484
    %673 = vmatprep.subr.bf16.mxu0 0
    %674 = vmatpush1.bf16.msra.mxu0 %v485
    %675 = vmatprep.subr.bf16.mxu0 0
    %676 = vmatpush1.bf16.msra.mxu0 %v486
    %677 = vmatprep.subr.bf16.mxu0 0
    %678 = vmatpush1.bf16.msra.mxu0 %v487
    %679 = vmatprep.subr.bf16.mxu0 0
    %680 = vmatpush1.bf16.msra.mxu0 %v488
    %681 = vmatprep.mubr.bf16.mxu0 %v54
    %682 = vmatmul.mubr.bf16.gmra.mrb[0].mxu0 %v53
    %v683 = vpop.f32.mrb[0].mxu0
    %v684 = vadd.f32 %v644, %v683
    %v685 = vpop.f32.mrb[0].mxu0
    %v686 = vpop.f32.mrb[0].mxu0
    %v687 = vpop.f32.mrb[0].mxu0
    %688 = vdwg.mxu0
    %689 = vmatprep.subr.bf16.mxu0 0
    %690 = vmatpush1.bf16.msra.mxu0 %v489
    %691 = vmatprep.subr.bf16.mxu0 0
    %692 = vmatpush1.bf16.msra.mxu0 %v490
    %693 = vmatprep.subr.bf16.mxu0 0
    %694 = vmatpush1.bf16.msra.mxu0 %v491
    %695 = vmatprep.subr.bf16.mxu0 0
    %696 = vmatpush1.bf16.msra.mxu0 %v492
    %697 = vmatprep.subr.bf16.mxu0 0
    %698 = vmatpush1.bf16.msra.mxu0 %v493
    %699 = vmatprep.subr.bf16.mxu0 0
    %700 = vmatpush1.bf16.msra.mxu0 %v494
    %701 = vmatprep.subr.bf16.mxu0 0
    %702 = vmatpush1.bf16.msra.mxu0 %v495
    %703 = vmatprep.subr.bf16.mxu0 0
    %704 = vmatpush1.bf16.msra.mxu0 %v496
    %705 = vmatprep.subr.bf16.mxu0 0
    %706 = vmatpush1.bf16.msra.mxu0 %v497
    %707 = vmatprep.subr.bf16.mxu0 0
    %708 = vmatpush1.bf16.msra.mxu0 %v498
    %709 = vmatprep.subr.bf16.mxu0 0
    %710 = vmatpush1.bf16.msra.mxu0 %v499
    %711 = vmatprep.subr.bf16.mxu0 0
    %712 = vmatpush1.bf16.msra.mxu0 %v500
    %713 = vmatprep.subr.bf16.mxu0 0
    %714 = vmatpush1.bf16.msra.mxu0 %v501
    %715 = vmatprep.subr.bf16.mxu0 0
    %716 = vmatpush1.bf16.msra.mxu0 %v502
    %717 = vmatprep.subr.bf16.mxu0 0
    %718 = vmatpush1.bf16.msra.mxu0 %v503
    %719 = vmatprep.subr.bf16.mxu0 0
    %720 = vmatpush1.bf16.msra.mxu0 %v504
    %721 = vmatprep.mubr.bf16.mxu0 %v56
    %722 = vmatmul.mubr.bf16.gmra.mrb[0].mxu0 %v55
    %v723 = vpop.f32.mrb[0].mxu0
    %v724 = vadd.f32 %v684, %v723
    %v725 = vpop.f32.mrb[0].mxu0
    %v726 = vpop.f32.mrb[0].mxu0
    %v727 = vpop.f32.mrb[0].mxu0
    %728 = vdwg.mxu0
    %v729 = vadd.f32 %v40, %v724
    %730 = vst [vmem:[#allocation2] sm:$0xff] %v729
    // Predicated region
    $region30: #{_lambda_.1} parent=1 // pred_check
      %p731 = pneg %p35
    $region31: #{_lambda_.1} parent=1 // pred_check_branch
      %733 = sbr.rel (%p731) target = $region33
    $region32: #{_lambda_.1} parent=1 // pred_region
      %v734 = vld [vmem:[#allocation2] sm:$0xff]
      %v735 = vld [vmem:[%s2] sm:$0x1]
      %v737 = vlaneseq
      %v738 = vshrl.u32 %v737, 7
      %v739 = vsub.s32 0, %v738
      %v740 = vrot.slane %v735, %v739
      %v742 = vadd.f32 %v734, %v740
      %v743 = vmax.f32 %v742, 0.0
      %v744 = vpack.c.bf16 %v743, %v743
      %v745 = vld [vmem:[%s3] sm:$0xf]
      %v746 = vld [vmem:[%s3 + $0x4] sm:$0xf]
      %v747 = vld [vmem:[%s3 + $0x8] sm:$0xf]
      %v748 = vld [vmem:[%s3 + $0xc] sm:$0xf]
      %v749 = vld [vmem:[%s3 + $0x10] sm:$0xf]
      %v750 = vld [vmem:[%s3 + $0x14] sm:$0xf]
      %v751 = vld [vmem:[%s3 + $0x18] sm:$0xf]
      %v752 = vld [vmem:[%s3 + $0x1c] sm:$0xf]
      %v753 = vld [vmem:[%s3 + $0x20] sm:$0xf]
      %v754 = vld [vmem:[%s3 + $0x24] sm:$0xf]
      %v755 = vld [vmem:[%s3 + $0x28] sm:$0xf]
      %v756 = vld [vmem:[%s3 + $0x2c] sm:$0xf]
      %v757 = vld [vmem:[%s3 + $0x30] sm:$0xf]
      %v758 = vld [vmem:[%s3 + $0x34] sm:$0xf]
      %v759 = vld [vmem:[%s3 + $0x38] sm:$0xf]
      %v760 = vld [vmem:[%s3 + $0x3c] sm:$0xf]
      %v761 = vld [vmem:[%s4] sm:$0x1]
      %v763 = vlaneseq
      %v764 = vshrl.u32 %v763, 7
      %v765 = vsub.s32 0, %v764
      %v766 = vrot.slane %v761, %v765
      %v784 = vunpack.c.l.b16 %v745
      %v785 = vunpack.c.l.b16 %v746
      %v786 = vunpack.c.l.b16 %v747
      %v787 = vunpack.c.l.b16 %v748
      %v788 = vunpack.c.l.b16 %v749
      %v789 = vunpack.c.l.b16 %v750
      %v790 = vunpack.c.l.b16 %v751
      %v791 = vunpack.c.l.b16 %v752
      %v792 = vunpack.c.l.b16 %v753
      %v793 = vunpack.c.l.b16 %v754
      %v794 = vunpack.c.l.b16 %v755
      %v795 = vunpack.c.l.b16 %v756
      %v796 = vunpack.c.l.b16 %v757
      %v797 = vunpack.c.l.b16 %v758
      %v798 = vunpack.c.l.b16 %v759
      %v799 = vunpack.c.l.b16 %v760
      %v800 = vpack.c.b16 %v785, %v784
      %v801 = vpack.c.b16 %v787, %v786
      %v802 = vpack.c.b16 %v789, %v788
      %v803 = vpack.c.b16 %v791, %v790
      %v804 = vpack.c.b16 %v793, %v792
      %v805 = vpack.c.b16 %v795, %v794
      %v806 = vpack.c.b16 %v797, %v796
      %v807 = vpack.c.b16 %v799, %v798
      %816 = vmatprep.subr.bf16.mxu0 0
      %817 = vmatpush1.bf16.msra.mxu0 %v800
      %818 = vmatprep.subr.bf16.mxu0 0
      %819 = vmatpush1.bf16.msra.mxu0 %v801
      %820 = vmatprep.subr.bf16.mxu0 0
      %821 = vmatpush1.bf16.msra.mxu0 %v802
      %822 = vmatprep.subr.bf16.mxu0 0
      %823 = vmatpush1.bf16.msra.mxu0 %v803
      %824 = vmatprep.subr.bf16.mxu0 0
      %825 = vmatpush1.bf16.msra.mxu0 %v804
      %826 = vmatprep.subr.bf16.mxu0 0
      %827 = vmatpush1.bf16.msra.mxu0 %v805
      %828 = vmatprep.subr.bf16.mxu0 0
      %829 = vmatpush1.bf16.msra.mxu0 %v806
      %830 = vmatprep.subr.bf16.mxu0 0
      %831 = vmatpush1.bf16.msra.mxu0 %v807
      %832 = vmatprep.subr.bf16.mxu0 0
      %833 = vmatpush1.bf16.msra.mxu0 0
      %834 = vmatprep.subr.bf16.mxu0 0
      %835 = vmatpush1.bf16.msra.mxu0 0
      %836 = vmatprep.subr.bf16.mxu0 0
      %837 = vmatpush1.bf16.msra.mxu0 0
      %838 = vmatprep.subr.bf16.mxu0 0
      %839 = vmatpush1.bf16.msra.mxu0 0
      %840 = vmatprep.subr.bf16.mxu0 0
      %841 = vmatpush1.bf16.msra.mxu0 0
      %842 = vmatprep.subr.bf16.mxu0 0
      %843 = vmatpush1.bf16.msra.mxu0 0
      %844 = vmatprep.subr.bf16.mxu0 0
      %845 = vmatpush1.bf16.msra.mxu0 0
      %846 = vmatprep.subr.bf16.mxu0 0
      %847 = vmatpush1.bf16.msra.mxu0 0
      %848 = vmatprep.mubr.bf16.mxu0 0
      %849 = vmatmul.mubr.bf16.gmra.mrb[0].mxu0 %v744
      %v850 = vpop.f32.mrb[0].mxu0
      %v851 = vadd.f32 %v766, %v850
      %v852 = vpop.f32.mrb[0].mxu0
      %v853 = vpop.f32.mrb[0].mxu0
      %v854 = vpop.f32.mrb[0].mxu0
      %855 = vdwg.mxu0
      %856 = vmax.xlane.f32.xlu0 %v851
      %v857 = vpop.xlane.xlu0 %856
      %v858 = vsub.f32 %v851, %v857
      %v859 = vmul.f32 %v858, 1.442695
      %v860 = vpow.pop %v859
      %861 = vadd.xlane.f32.xlu0 %v860
      %v862 = vpop.xlane.xlu0 %861
      %v863 = vrcp.pop %v862
      %v864 = vmul.f32 %v862, %v863
      %v865 = vsub.f32 2.0, %v864
      %v866 = vmul.f32 %v863, %v865
      %v867 = vmul.f32 %v860, %v866
      %868 = vst [vmem:[%s5] sm:$0xff] %v867
    $region33: #{_lambda_.1} parent=1 // pred_fallthru
      _
    // Predicated region
    $region34: #{_lambda_.1} parent=1 // pred_check
      _
    $region35: #{_lambda_.1} parent=1 // pred_check_branch
      %870 = sbr.rel (0) target = $region37
    $region36: #{_lambda_.1} parent=1 // pred_region
      _
    $region37: #{_lambda_.1} parent=1 // pred_fallthru
      _
    // Predicated region
    $region38: #{_lambda_.1} parent=1 // pred_check
      _
    $region39: #{_lambda_.1} parent=1 // pred_check_branch
      %872 = sbr.rel (0) target = $region41
    $region40: #{_lambda_.1} parent=1 // pred_region
      _
    $region41: #{_lambda_.1} parent=1 // pred_fallthru
      _
    %873 = vsyncpa [#allocation4], 1

</llo_original>
